<compile_context>
chip_gen: v7x
topology: tpu7x:2x2x1
jax: 0.10.0
libtpu: 0.0.40
codegen_flags: <defaults>
</compile_context>

<pallas_src>
import functools

import jax
import jax.numpy as jnp
from jax import lax
from jax.experimental import pallas as pl
from jax.experimental.pallas import tpu as pltpu

ALPHA = 0.75
GAMMA = 2.0
LANES = 128
SUBLANES = 8


def _vfocal_kernel(pred_ref, tgt_ref, out_ref, *, alpha, gamma, tile_rows,
                   last_valid_rows, ragged):
    x = pred_ref[...].astype(jnp.float32)            # logits
    label = tgt_ref[...].astype(jnp.float32)

    # Mask the unspecified rows of the (possibly partial) last grid block by
    # forcing their label to -1 ("ignore"); the select chain below then zeroes
    # both the loss and the positive count for them (any NaN/Inf from garbage
    # logits is discarded by the select, not multiplied).  Emitted only when
    # the grid is actually ragged (trace-time Python bool).
    if ragged:
        last = pl.num_programs(0) - 1
        limit = jnp.where(pl.program_id(0) == last, last_valid_rows, tile_rows)
        row_ids = lax.broadcasted_iota(jnp.int32, x.shape, 0)
        label = jnp.where(row_ids < limit, label, -1.0)

    # --- BCE(sigmoid(x), label) straight from logits, one shared exp ---------
    #   -log(p)   = softplus(-x) = max(-x, 0) + log(1 + exp(-|x|))
    #   -log(1-p) = softplus( x) = max( x, 0) + log(1 + exp(-|x|))
    #   torch clamps log terms at -100  <=>  clamp the softplus terms at +100.
    e = jnp.exp(-jnp.abs(x))                          # EUP #1
    log1pe = jnp.log(1.0 + e)                         # EUP #2
    sp_pos = jnp.minimum(jnp.maximum(x, 0.0) + log1pe, 100.0)    # = -log(1-p)
    sp_neg = jnp.minimum(jnp.maximum(-x, 0.0) + log1pe, 100.0)   # = -log(p)
    bce = label * sp_neg + (1.0 - label) * sp_pos

    # Negative-branch focal term.  Every element the original module feeds to
    # BCE on the negative branch has label == 0 (label == -1 is filtered out,
    # and torch BCE rejects targets outside [0,1]), so
    #   |p - label|^gamma == p^gamma == exp(-gamma * (-log p)).
    # exp lands on the EUP slot (which has slack) instead of a VALU divide +
    # compare/select chain for sigmoid.
    pow_term = jnp.exp(-gamma * sp_neg)               # EUP #3

    fw = jnp.where(label > 0.0, label, alpha * pow_term)
    loss = jnp.where(label == -1.0, 0.0, bce * fw)
    pos = (label > 0.0).astype(jnp.float32)

    # Reduce the (tile_rows, 128) block to one (8,128) vreg per quantity with
    # pure VPU adds (the reshape is (8,128)-tile aligned -> layout-free) and
    # write both into a single lane-dense output slab:
    #   rows 0..7  -> loss partial sums, rows 8..15 -> positive-count partials.
    r, l = loss.shape
    out_ref[0, :SUBLANES] = jnp.sum(loss.reshape(r // SUBLANES, SUBLANES, l), axis=0)
    out_ref[0, SUBLANES:] = jnp.sum(pos.reshape(r // SUBLANES, SUBLANES, l), axis=0)


def _row_align(dtype):
    # Sublane packing granularity: 8 rows for 32-bit, 16 for bf16, 32 for 8-bit.
    itemsize = jnp.dtype(dtype).itemsize
    return SUBLANES * max(1, 4 // itemsize)


def vfocal_loss(pred, target, *, alpha=ALPHA, gamma=GAMMA, tile_rows=4096):
    """pred, target: (B, HW) (any shape; flattened internally). Returns scalar f32 loss."""
    assert pred.shape == target.shape
    n = int(pred.size)

    # Minimal padding: only up to the packing granularity of the input dtypes.
    # If n is already a multiple (common case) this is a pure reshape, no copy.
    row_align = max(_row_align(pred.dtype), _row_align(target.dtype))
    elems_align = row_align * LANES
    n_padded = -(-n // elems_align) * elems_align
    pad = n_padded - n

    pred_flat = jnp.reshape(pred, (-1,))
    tgt_flat = jnp.reshape(target, (-1,))
    if pad:
        pred_flat = jnp.pad(pred_flat, (0, pad))                    # logit 0
        tgt_flat = jnp.pad(tgt_flat, (0, pad), constant_values=-1)  # "ignore"
    rows = n_padded // LANES
    pred2d = pred_flat.reshape(rows, LANES)
    tgt2d = tgt_flat.reshape(rows, LANES)

    # Tile selection: cap at 4096 rows (fits default scoped VMEM on every
    # generation, incl. v7x's 64 MiB) and guarantee >= 2 grid steps whenever
    # the input has >= 2 row groups, so v7x megacore gets both TensorCores.
    tile_rows = max(row_align, min(int(tile_rows), rows))
    tile_rows -= tile_rows % row_align
    n_tiles = -(-rows // tile_rows)
    if rows >= 2 * row_align and n_tiles < 2:
        half = -(-rows // 2)
        half = -(-half // row_align) * row_align
        tile_rows = min(tile_rows, half)
        n_tiles = -(-rows // tile_rows)

    ragged = (rows % tile_rows) != 0
    last_valid_rows = rows - (n_tiles - 1) * tile_rows

    kernel = functools.partial(
        _vfocal_kernel, alpha=float(alpha), gamma=float(gamma),
        tile_rows=tile_rows, last_valid_rows=last_valid_rows, ragged=ragged)

    total = rows * LANES
    cost = pl.CostEstimate(
        flops=22 * total,
        transcendentals=3 * total,
        bytes_accessed=int(pred2d.size * pred2d.dtype.itemsize
                           + tgt2d.size * tgt2d.dtype.itemsize
                           + n_tiles * 2 * SUBLANES * LANES * 4),
    )

    parts = pl.pallas_call(
        kernel,
        out_shape=jax.ShapeDtypeStruct((n_tiles, 2 * SUBLANES, LANES), jnp.float32),
        grid_spec=pltpu.PrefetchScalarGridSpec(
            num_scalar_prefetch=0,
            grid=(n_tiles,),
            in_specs=[
                pl.BlockSpec((tile_rows, LANES), lambda i: (i, 0)),
                pl.BlockSpec((tile_rows, LANES), lambda i: (i, 0)),
            ],
            out_specs=pl.BlockSpec((1, 2 * SUBLANES, LANES), lambda i: (i, 0, 0)),
        ),
        compiler_params=pltpu.CompilerParams(
            # Every grid step writes its own output block (no carried state),
            # so the axis is safely "parallel" (2x on v7x megacore).
            dimension_semantics=("parallel",),
        ),
        cost_estimate=cost,
    )(pred2d, tgt2d)

    loss_sum = jnp.sum(parts[:, :SUBLANES, :])
    pos_num = jnp.maximum(jnp.sum(parts[:, SUBLANES:, :]), 1.0)
    return loss_sum / pos_num


def vfocal_loss_ref(pred, target, *, alpha=ALPHA, gamma=GAMMA):
    """Pure-JAX reference mirroring the PyTorch module."""
    p = jax.nn.sigmoid(pred.astype(jnp.float32)).reshape(-1)
    label = target.astype(jnp.float32).reshape(-1)
    pos_num = jnp.maximum(jnp.sum(label > 0.0).astype(jnp.float32), 1.0)
    valid = (label != -1.0).astype(jnp.float32)
    fw = label * (label > 0.0) + alpha * jnp.abs(p - label) ** gamma * (label <= 0.0)
    bce = -(label * jnp.maximum(jnp.log(p), -100.0)
            + (1.0 - label) * jnp.maximum(jnp.log(1.0 - p), -100.0))
    return jnp.sum(bce * fw * valid) / pos_num


def _make_inputs(key, shape):
    k_pred, k_lab, k_soft = jax.random.split(key, 3)
    pred = jax.random.normal(k_pred, shape, dtype=jnp.float32)           # logits
    # labels: mixture of ignore (-1), negatives (0) and soft positives in (0.3, 1]
    cat = jax.random.randint(k_lab, shape, 0, 4)
    soft = jax.random.uniform(k_soft, shape, minval=0.3, maxval=1.0, dtype=jnp.float32)
    target = jnp.where(cat == 0, -1.0, jnp.where(cat == 1, 0.0, soft)).astype(jnp.float32)
    return pred, target


if __name__ == "__main__":
    key = jax.random.PRNGKey(0)
    k1, k2 = jax.random.split(key)

    # Case 1: B=2, HW=16*16 -> aligned, single tile.
    pred, target = _make_inputs(k1, (2, 16 * 16))
    loss = vfocal_loss(pred, target)
    jax.block_until_ready(loss)
    ref = vfocal_loss_ref(pred, target)
    assert jnp.allclose(loss, ref, rtol=1e-5, atol=1e-5), (loss, ref)

    # Case 2: B=2, HW=1200 -> exercises minimal pad, 2-tile split and the
    # in-kernel ragged-last-block mask.
    pred2, target2 = _make_inputs(k2, (2, 1200))
    loss2 = vfocal_loss(pred2, target2)
    jax.block_until_ready(loss2)
    ref2 = vfocal_loss_ref(pred2, target2)
    assert jnp.allclose(loss2, ref2, rtol=1e-5, atol=1e-5), (loss2, ref2)

    print("KERNEL_OK")
</pallas_src>

<mosaic_0001>
module attributes {stable_mosaic.version = 11 : i64} {
  func.func @_vfocal_kernel(%arg0: i32, %arg1: memref<8x128xf32, #tpu.memory_space<vmem>>, %arg2: memref<8x128xf32, #tpu.memory_space<vmem>>, %arg3: memref<1x16x128xf32, #tpu.memory_space<vmem>>) attributes {dimension_semantics = [#tpu.dimension_semantics<parallel>], iteration_bounds = array<i64: 1>, scalar_prefetch = 0 : i64, scratch_operands = 0 : i64, tpu.core_type = #tpu.core_type<tc>, window_params = [{transform_indices = @transform_0, window_bounds = array<i64: 8, 128>}, {transform_indices = @transform_1, window_bounds = array<i64: 8, 128>}, {transform_indices = @transform_2, window_bounds = array<i64: 1, 16, 128>}]} {
    %c0 = arith.constant 0 : index
    %c0_0 = arith.constant 0 : index
    %0 = vector.load %arg1[%c0, %c0_0] : memref<8x128xf32, #tpu.memory_space<vmem>>, vector<8x128xf32>
    %c0_1 = arith.constant 0 : index
    %c0_2 = arith.constant 0 : index
    %1 = vector.load %arg2[%c0_1, %c0_2] : memref<8x128xf32, #tpu.memory_space<vmem>>, vector<8x128xf32>
    %2 = math.absf %0 : vector<8x128xf32>
    %cst = arith.constant 0.000000e+00 : f32
    %3 = vector.broadcast %cst : f32 to vector<8x128xf32>
    %4 = arith.subf %3, %2 : vector<8x128xf32>
    %5 = math.exp %4 : vector<8x128xf32>
    %cst_3 = arith.constant 1.000000e+00 : f32
    %6 = vector.broadcast %cst_3 : f32 to vector<8x128xf32>
    %7 = arith.addf %6, %5 : vector<8x128xf32>
    %8 = math.log %7 : vector<8x128xf32>
    %cst_4 = arith.constant 0.000000e+00 : f32
    %9 = vector.broadcast %cst_4 : f32 to vector<8x128xf32>
    %10 = arith.maximumf %0, %9 : vector<8x128xf32>
    %11 = arith.addf %10, %8 : vector<8x128xf32>
    %cst_5 = arith.constant 1.000000e+02 : f32
    %12 = vector.broadcast %cst_5 : f32 to vector<8x128xf32>
    %13 = arith.minimumf %11, %12 : vector<8x128xf32>
    %cst_6 = arith.constant 0.000000e+00 : f32
    %14 = vector.broadcast %cst_6 : f32 to vector<8x128xf32>
    %15 = arith.subf %14, %0 : vector<8x128xf32>
    %cst_7 = arith.constant 0.000000e+00 : f32
    %16 = vector.broadcast %cst_7 : f32 to vector<8x128xf32>
    %17 = arith.maximumf %15, %16 : vector<8x128xf32>
    %18 = arith.addf %17, %8 : vector<8x128xf32>
    %cst_8 = arith.constant 1.000000e+02 : f32
    %19 = vector.broadcast %cst_8 : f32 to vector<8x128xf32>
    %20 = arith.minimumf %18, %19 : vector<8x128xf32>
    %21 = arith.mulf %1, %20 : vector<8x128xf32>
    %cst_9 = arith.constant 1.000000e+00 : f32
    %22 = vector.broadcast %cst_9 : f32 to vector<8x128xf32>
    %23 = arith.subf %22, %1 : vector<8x128xf32>
    %24 = arith.mulf %23, %13 : vector<8x128xf32>
    %25 = arith.addf %21, %24 : vector<8x128xf32>
    %cst_10 = arith.constant -2.000000e+00 : f32
    %26 = vector.broadcast %cst_10 : f32 to vector<8x128xf32>
    %27 = arith.mulf %26, %20 : vector<8x128xf32>
    %28 = math.exp %27 : vector<8x128xf32>
    %cst_11 = arith.constant 0.000000e+00 : f32
    %29 = vector.broadcast %cst_11 : f32 to vector<8x128xf32>
    %30 = arith.cmpf ogt, %1, %29 : vector<8x128xf32>
    %cst_12 = arith.constant 7.500000e-01 : f32
    %31 = vector.broadcast %cst_12 : f32 to vector<8x128xf32>
    %32 = arith.mulf %31, %28 : vector<8x128xf32>
    %33 = arith.select %30, %1, %32 : vector<8x128xi1>, vector<8x128xf32>
    %cst_13 = arith.constant -1.000000e+00 : f32
    %34 = vector.broadcast %cst_13 : f32 to vector<8x128xf32>
    %35 = arith.cmpf oeq, %1, %34 : vector<8x128xf32>
    %36 = arith.mulf %25, %33 : vector<8x128xf32>
    %cst_14 = arith.constant 0.000000e+00 : f32
    %37 = vector.broadcast %cst_14 : f32 to vector<8x128xf32>
    %38 = arith.select %35, %37, %36 : vector<8x128xi1>, vector<8x128xf32>
    %cst_15 = arith.constant 0.000000e+00 : f32
    %39 = vector.broadcast %cst_15 : f32 to vector<8x128xf32>
    %40 = arith.cmpf ogt, %1, %39 : vector<8x128xf32>
    %41 = arith.extui %40 : vector<8x128xi1> to vector<8x128xi32>
    %42 = arith.sitofp %41 : vector<8x128xi32> to vector<8x128xf32>
    %43 = vector.shape_cast %38 : vector<8x128xf32> to vector<1x8x128xf32>
    %cst_16 = arith.constant dense<0.000000e+00> : vector<8x128xf32>
    %44 = vector.multi_reduction <add>, %43, %cst_16 [0] : vector<1x8x128xf32> to vector<8x128xf32>
    %c0_17 = arith.constant 0 : index
    %c0_18 = arith.constant 0 : index
    %c0_19 = arith.constant 0 : index
    %45 = vector.load %arg3[%c0_17, %c0_18, %c0_19] : memref<1x16x128xf32, #tpu.memory_space<vmem>>, vector<1x8x128xf32>
    %46 = vector.shape_cast %45 : vector<1x8x128xf32> to vector<8x128xf32>
    %47 = vector.shape_cast %44 : vector<8x128xf32> to vector<1x8x128xf32>
    tpu.vector_store %arg3[%c0_17, %c0_18, %c0_19], %47 {strides = array<i32>} : memref<1x16x128xf32, #tpu.memory_space<vmem>>, vector<1x8x128xf32>,
    %48 = vector.shape_cast %42 : vector<8x128xf32> to vector<1x8x128xf32>
    %cst_20 = arith.constant dense<0.000000e+00> : vector<8x128xf32>
    %49 = vector.multi_reduction <add>, %48, %cst_20 [0] : vector<1x8x128xf32> to vector<8x128xf32>
    %c0_21 = arith.constant 0 : index
    %c8 = arith.constant 8 : index
    %c0_22 = arith.constant 0 : index
    %50 = vector.load %arg3[%c0_21, %c8, %c0_22] : memref<1x16x128xf32, #tpu.memory_space<vmem>>, vector<1x8x128xf32>
    %51 = vector.shape_cast %50 : vector<1x8x128xf32> to vector<8x128xf32>
    %52 = vector.shape_cast %49 : vector<8x128xf32> to vector<1x8x128xf32>
    tpu.vector_store %arg3[%c0_21, %c8, %c0_22], %52 {strides = array<i32>} : memref<1x16x128xf32, #tpu.memory_space<vmem>>, vector<1x8x128xf32>,
    return
  }
  func.func @transform_0(%arg0: i32) -> (i32, i32) {
    %c0_i32 = arith.constant 0 : i32
    %c0_i32_0 = arith.constant 0 : i32
    return %arg0, %c0_i32 : i32, i32
  }
  func.func @transform_1(%arg0: i32) -> (i32, i32) {
    %c0_i32 = arith.constant 0 : i32
    %c0_i32_0 = arith.constant 0 : i32
    return %arg0, %c0_i32 : i32, i32
  }
  func.func @transform_2(%arg0: i32) -> (i32, i32, i32) {
    %c0_i32 = arith.constant 0 : i32
    %c0_i32_0 = arith.constant 0 : i32
    %c0_i32_1 = arith.constant 0 : i32
    return %arg0, %c0_i32, %c0_i32_0 : i32, i32, i32
  }
}

</mosaic_0001>

<llo_original>
// kernel: tpu_custom_call.1
$region0: #{tpu_custom_call.1}
  #allocation0 [shape = 'u32[]', space=smem, size = 0x4, offset = 0x4, fixed_abs, tag = 'smem constant byte address 0x4 - core index']
  #allocation1 [shape = 'u32[144,128]{1,0:T(1,128)}', space=vmem, size = 0x12000, scoped, tag = 'internal scratch']
  %s0 = inlined_call_operand.hbm [shape: f32[8,128], index: 0, kind: input, shape index: {}]
  %s1 = inlined_call_operand.hbm [shape: f32[8,128], index: 1, kind: input, shape index: {}]
  %s2 = inlined_call_operand.hbm [shape: f32[1,16,128], index: 2, kind: output, shape index: {}]
  %s3 = sld [smem:[#allocation0]]
  $region26: #{tpu_custom_call.1} parent=0
    _
  %s5 = ssub.s32 1, %s3
  %s6 = scalar_select 0, %s5, %s3
  $region1: #{tpu_custom_call.1} parent=0
    #allocation2 [shape = 'u8[4096]{0}', space=vmem, size = 0x1000, scoped, tag = 'input window, operand 0, single buffered']
    #allocation3 [shape = 's32[1]{0}', space=sflag, size = 0x4, scoped, tag = 'scoped memory for tpu_custom_call.1']
    #allocation4 [shape = 's32[1]{0}', space=sflag, size = 0x4, scoped, tag = 'scoped memory for tpu_custom_call.1']
    #allocation5 [shape = 'u8[4096]{0}', space=vmem, size = 0x1000, scoped, tag = 'input window, operand 1, single buffered']
    #allocation6 [shape = 's32[1]{0}', space=sflag, size = 0x4, scoped, tag = 'scoped memory for tpu_custom_call.1']
    #allocation7 [shape = 'u8[8192]{0}', space=vmem, size = 0x2000, scoped, tag = 'output window, operand 0, single buffered']
    %7 = vsyncpa [#allocation3], 0
    %8 = vsyncpa [#allocation6], 0
    %9 = vsyncpa [#allocation4], 0
    // Predicated region
    $region2: #{tpu_custom_call.1} parent=1 // pred_check
      _
    $region3: #{tpu_custom_call.1} parent=1 // pred_check_branch
      %11 = sbr.rel (0) target = $region5
    $region4: #{tpu_custom_call.1} parent=1 // pred_region
      %s13 = ssub.s32 128, 128
      %14 = vsyncadd [#allocation3], %s13
      %s16 = sshll.u32 [#allocation2], 4
      %s17 = int_to_ptr.vmem [resolvable:$true] %s16
      %19 = dma.hbm_to_vmem [thread:$0]  %s0, 128, %s17, [#allocation3]
    $region5: #{tpu_custom_call.1} parent=1 // pred_fallthru
      _
    // Predicated region
    $region6: #{tpu_custom_call.1} parent=1 // pred_check
      _
    $region7: #{tpu_custom_call.1} parent=1 // pred_check_branch
      %21 = sbr.rel (0) target = $region9
    $region8: #{tpu_custom_call.1} parent=1 // pred_region
      %s23 = ssub.s32 128, 128
      %24 = vsyncadd [#allocation6], %s23
      %s26 = sshll.u32 [#allocation5], 4
      %s27 = int_to_ptr.vmem [resolvable:$true] %s26
      %29 = dma.hbm_to_vmem [thread:$0]  %s1, 128, %s27, [#allocation6]
    $region9: #{tpu_custom_call.1} parent=1 // pred_fallthru
      _
    // Predicated region
    $region10: #{tpu_custom_call.1} parent=1 // pred_check
      _
    $region11: #{tpu_custom_call.1} parent=1 // pred_check_branch
      %31 = sbr.rel (0) target = $region13
    $region12: #{tpu_custom_call.1} parent=1 // pred_region
      %32 = dma.done [#allocation3], 128
    $region13: #{tpu_custom_call.1} parent=1 // pred_fallthru
      _
    // Predicated region
    $region14: #{tpu_custom_call.1} parent=1 // pred_check
      _
    $region15: #{tpu_custom_call.1} parent=1 // pred_check_branch
      %34 = sbr.rel (0) target = $region17
    $region16: #{tpu_custom_call.1} parent=1 // pred_region
      %35 = dma.done [#allocation6], 128
    $region17: #{tpu_custom_call.1} parent=1 // pred_fallthru
      _
    %v36 = vld [vmem:[#allocation2] sm:$0xff]
    %v37 = vld [vmem:[#allocation5] sm:$0xff]
    %v38 = vand.u32 2147483647, %v36
    %v39 = vsub.f32 0.0, %v38
    %v40 = vmul.f32 %v39, 1.442695
    %v41 = vpow.pop %v40
    %v42 = vadd.f32 %v41, 1.0
    %v43 = vlog2.pop %v42
    %v44 = vmul.f32 %v43, 0.6931472
    %v45 = vmax.f32 %v36, 0.0
    %v46 = vadd.f32 %v45, %v44
    %v47 = vmin.f32 %v46, 100.0
    %v48 = vsub.f32 0.0, %v36
    %v49 = vmax.f32 %v48, 0.0
    %v50 = vadd.f32 %v49, %v44
    %v51 = vmin.f32 %v50, 100.0
    %v52 = vmul.f32 %v37, %v51
    %v53 = vsub.f32 1.0, %v37
    %v54 = vmul.f32 %v53, %v47
    %v55 = vadd.f32 %v52, %v54
    %v56 = vmul.f32 %v51, -2.0
    %v57 = vmul.f32 %v56, 1.442695
    %v58 = vpow.pop %v57
    %vm59 = vcmp.gt.f32.partialorder %v37, 0.0
    %v60 = vmul.f32 %v58, 0.75
    %v61 = vsel %vm59, %v37, %v60
    %vm62 = vcmp.eq.f32.partialorder %v37, -1.0
    %v63 = vmul.f32 %v55, %v61
    %v64 = vsel %vm62, 0.0, %v63
    %v65 = vsel %vm59, 1, 0
    %v66 = vcvt.s32.f32 %v65
    %v67 = vadd.f32 %v64, 0.0
    %68 = vst [vmem:[#allocation7] sm:$0xff] %v67
    %v69 = vadd.f32 %v66, 0.0
    %70 = vst [vmem:[#allocation7 + $0x8] sm:$0xff] %v69
    // Predicated region
    $region18: #{tpu_custom_call.1} parent=1 // pred_check
      _
    $region19: #{tpu_custom_call.1} parent=1 // pred_check_branch
      %72 = sbr.rel (0) target = $region21
    $region20: #{tpu_custom_call.1} parent=1 // pred_region
      %s74 = ssub.s32 256, 256
      %75 = vsyncadd [#allocation4], %s74
      %s76 = sshll.u32 [#allocation7], 4
      %s77 = int_to_ptr.vmem [resolvable:$true] %s76
      %82 = dma.vmem_to_hbm [thread:$0]  %s77, 256, %s2, [#allocation4], 128, 128, 8
    $region21: #{tpu_custom_call.1} parent=1 // pred_fallthru
      _
    // Predicated region
    $region22: #{tpu_custom_call.1} parent=1 // pred_check
      _
    $region23: #{tpu_custom_call.1} parent=1 // pred_check_branch
      %84 = sbr.rel (0) target = $region25
    $region24: #{tpu_custom_call.1} parent=1 // pred_region
      %85 = dma.done [#allocation4], 256
    $region25: #{tpu_custom_call.1} parent=1 // pred_fallthru
      _
    %86 = vsyncpa [#allocation3], 1
    %87 = vsyncpa [#allocation6], 1
    %88 = vsyncpa [#allocation4], 1

</llo_original>
